<compile_context>
chip_gen: v5e
topology: v5e:2x2
jax: 0.10.0
libtpu: 0.0.40
codegen_flags: <defaults>
</compile_context>

<pallas_src>
import functools
import math

import jax
import jax.numpy as jnp
from jax import lax
from jax.experimental import pallas as pl
from jax.experimental.pallas import tpu as pltpu


# --------------------------------------------------------------------------- helpers
def _round_up(x, m):
    return ((x + m - 1) // m) * m


@functools.lru_cache(maxsize=None)
def _vmem_ceiling():
    """3/4 of physical per-core VMEM (headroom for compiler scratch / semaphores)."""
    try:
        cap = int(pltpu.get_tpu_info().vmem_capacity_bytes)
    except Exception:
        cap = 0
    if cap <= 0:
        cap = 64 << 20          # conservative: v7x per-TC VMEM
    return (cap * 3) // 4


def _vmem_limit(nbytes):
    return int(min(max(int(nbytes), 8 << 20), _vmem_ceiling()))


def _row_block(m):
    """Row tile for the pre-gate / projection matmuls (bigger tiles amortize
    per-grid-step overhead; 512 reaches ~85% of HBM roofline for mem-bound cases)."""
    if m >= 512:
        return 512
    if m >= 256:
        return 256
    return _round_up(m, 8)


def _batch_tile(n):
    """Batch tile for the recurrence: aim for >= 2 grid points along the
    'parallel' axis when possible (v7x has 2 TensorCores), capped at 128 rows."""
    if n <= 8:
        return 8
    return min(128, _round_up((n + 1) // 2, 8))


def _chunk_len(t, tn, h, itemsize):
    """Time-chunk length for the streamed recurrence: keep the double-buffered
    per-chunk pre-gate + hidden-out buffers within ~1/3 of the VMEM ceiling."""
    per_step = 4 * tn * 5 * h * itemsize      # 2 dirs x 2 buffers x (4H in + H out)
    budget = max(4 << 20, _vmem_ceiling() // 3)
    return int(max(1, min(t, 32, budget // per_step)))


# --------------------------------------------------------------------------- Buffered(1) probe
_BUFFERED1_OK = None


def _buffered1_ok():
    """Probe (once) whether pipeline_mode=pl.Buffered(1) lowers on this backend."""
    global _BUFFERED1_OK
    if _BUFFERED1_OK is None:
        try:
            def _k(x_ref, w_ref, o_ref):
                o_ref[...] = x_ref[...] + w_ref[...]

            spec = pl.BlockSpec((8, 128), lambda i: (0, 0),
                                pipeline_mode=pl.Buffered(1))
            f = pl.pallas_call(
                _k,
                out_shape=jax.ShapeDtypeStruct((8, 128), jnp.float32),
                grid=(2,),
                in_specs=[pl.BlockSpec((8, 128), lambda i: (0, 0)), spec],
                out_specs=pl.BlockSpec((8, 128), lambda i: (0, 0)))
            jax.block_until_ready(f(jnp.zeros((8, 128), jnp.float32),
                                    jnp.ones((8, 128), jnp.float32)))
            _BUFFERED1_OK = True
        except Exception:
            _BUFFERED1_OK = False
    return _BUFFERED1_OK


def _const_spec(shape, grid_ndim):
    """BlockSpec for a block whose index never changes (weights / biases).
    Double buffering such blocks is pure VMEM waste -> single-buffer if supported."""
    zero = (0,) * len(shape)
    if grid_ndim == 1:
        index_map = lambda i: zero            # noqa: E731
    else:
        index_map = lambda i, j: zero         # noqa: E731
    if _buffered1_ok():
        return pl.BlockSpec(shape, index_map, pipeline_mode=pl.Buffered(1))
    return pl.BlockSpec(shape, index_map)


# --------------------------------------------------------------------------- kernels
def _pregate_first_kernel(x_ref, wf_ref, wb_ref, bf_ref, bb_ref, of_ref, ob_ref):
    """Layer-0 pre-gates: one x tile load, two (fwd/bwd) matmuls, f32 accumulate."""
    x = x_ref[...]
    of_ref[...] = (jnp.dot(x, wf_ref[...], preferred_element_type=jnp.float32)
                   + bf_ref[...]).astype(of_ref.dtype)
    ob_ref[...] = (jnp.dot(x, wb_ref[...], preferred_element_type=jnp.float32)
                   + bb_ref[...]).astype(ob_ref.dtype)


def _pregate_dual_kernel(a_ref, b_ref, wfa_ref, wfb_ref, wba_ref, wbb_ref,
                         bf_ref, bb_ref, of_ref, ob_ref):
    """Layer>=1 pre-gates from split (hf | hb) inputs; no (T,N,2H) concat needed."""
    a = a_ref[...]
    b = b_ref[...]
    of_ref[...] = (jnp.dot(a, wfa_ref[...], preferred_element_type=jnp.float32)
                   + jnp.dot(b, wfb_ref[...], preferred_element_type=jnp.float32)
                   + bf_ref[...]).astype(of_ref.dtype)
    ob_ref[...] = (jnp.dot(a, wba_ref[...], preferred_element_type=jnp.float32)
                   + jnp.dot(b, wbb_ref[...], preferred_element_type=jnp.float32)
                   + bb_ref[...]).astype(ob_ref.dtype)


def _dual_matmul_bias_kernel(a_ref, b_ref, wa_ref, wb_ref, bias_ref, o_ref):
    """Final projection: hf @ Wa + hb @ Wb + bias."""
    o_ref[...] = (jnp.dot(a_ref[...], wa_ref[...], preferred_element_type=jnp.float32)
                  + jnp.dot(b_ref[...], wb_ref[...], preferred_element_type=jnp.float32)
                  + bias_ref[...]).astype(o_ref.dtype)


def _bilstm_chunk_kernel(pgf_ref, pgb_ref, whhf_ref, whhb_ref, hf_ref, hb_ref,
                         hfc_ref, cfc_ref, hbc_ref, cbc_ref):
    """Fused fwd+bwd LSTM recurrence over one streamed T-chunk.

    pgf_ref: (CT, tn, 4H) fwd pre-gates for chunk t          (x @ Wih_f + b_f)
    pgb_ref: (CT, tn, 4H) bwd pre-gates for chunk nc-1-t     (x @ Wih_b + b_b)
    whh*_ref: (H, 4H) transposed recurrent weights (PyTorch gate order i,f,g,o)
    hf_ref/hb_ref: (CT, tn, H) per-chunk hidden outputs
    *_c_ref: (tn, H) f32 carries persisting across the chunk ("arbitrary") axis
    """
    CT = pgf_ref.shape[0]
    H = whhf_ref.shape[0]

    @pl.when(pl.program_id(1) == 0)
    def _():
        hfc_ref[...] = jnp.zeros_like(hfc_ref)
        cfc_ref[...] = jnp.zeros_like(cfc_ref)
        hbc_ref[...] = jnp.zeros_like(hbc_ref)
        cbc_ref[...] = jnp.zeros_like(cbc_ref)

    whh_f = whhf_ref[...]
    whh_b = whhb_ref[...]

    def cell(pre, h, c, whh):
        gates = (pre.astype(jnp.float32)
                 + jnp.dot(h.astype(whh.dtype), whh,
                           preferred_element_type=jnp.float32))
        i = jax.nn.sigmoid(gates[:, 0:H])
        f = jax.nn.sigmoid(gates[:, H:2 * H])
        g = jnp.tanh(gates[:, 2 * H:3 * H])
        o = jax.nn.sigmoid(gates[:, 3 * H:4 * H])
        c_new = f * c + i * g
        h_new = o * jnp.tanh(c_new)
        return h_new, c_new

    def body(k, carry):
        hf, cf, hb, cb = carry
        kb = CT - 1 - k
        hf, cf = cell(pgf_ref[k], hf, cf, whh_f)      # forward walks the chunk forward
        hb, cb = cell(pgb_ref[kb], hb, cb, whh_b)     # backward walks it in reverse
        hf_ref[k] = hf.astype(hf_ref.dtype)
        hb_ref[kb] = hb.astype(hb_ref.dtype)
        return (hf, cf, hb, cb)

    # TODO(synk): keep Whh stationary in the MXU across steps
    # (pltpu.matmul_push_rhs / matmul_acc_lhs / matmul_pop) for small batch tiles.
    hf, cf, hb, cb = lax.fori_loop(
        0, CT, body,
        (hfc_ref[...], cfc_ref[...], hbc_ref[...], cbc_ref[...]),
        unroll=2)  # unroll=4 only after verifying no vreg spills at H>=512
    hfc_ref[...] = hf
    cfc_ref[...] = cf
    hbc_ref[...] = hb
    cbc_ref[...] = cb


# --------------------------------------------------------------------------- pallas wrappers
def pregate_first_pallas(x2d, w_f, w_b, b_f, b_b, out_dtype):
    """x2d: (M, K) -> (pg_f, pg_b), each (M, 4H)."""
    M, K = x2d.shape
    G = w_f.shape[1]
    tm = _row_block(M)
    m_pad = _round_up(M, tm)
    if m_pad != M:
        x2d = jnp.pad(x2d, ((0, m_pad - M), (0, 0)))
    itm = jnp.dtype(x2d.dtype).itemsize
    oitm = jnp.dtype(out_dtype).itemsize
    vmem = _vmem_limit(2 * itm * tm * K + 2 * itm * 2 * K * G + 2 * 4 * 2 * G
                       + 2 * oitm * 2 * tm * G + (4 << 20))
    of, ob = pl.pallas_call(
        _pregate_first_kernel,
        out_shape=(jax.ShapeDtypeStruct((m_pad, G), out_dtype),
                   jax.ShapeDtypeStruct((m_pad, G), out_dtype)),
        grid=(m_pad // tm,),
        in_specs=[pl.BlockSpec((tm, K), lambda i: (i, 0)),
                  _const_spec((K, G), 1),
                  _const_spec((K, G), 1),
                  _const_spec((1, G), 1),
                  _const_spec((1, G), 1)],
        out_specs=(pl.BlockSpec((tm, G), lambda i: (i, 0)),
                   pl.BlockSpec((tm, G), lambda i: (i, 0))),
        compiler_params=pltpu.CompilerParams(
            dimension_semantics=("parallel",), vmem_limit_bytes=vmem),
        cost_estimate=pl.CostEstimate(
            flops=2 * 2 * m_pad * K * G, transcendentals=0,
            bytes_accessed=itm * (m_pad * K + 2 * K * G) + oitm * 2 * m_pad * G),
    )(x2d, w_f, w_b, b_f, b_b)
    if m_pad != M:
        of, ob = of[:M], ob[:M]
    return of, ob


def pregate_dual_pallas(a, b, wfa, wfb, wba, wbb, b_f, b_b, out_dtype):
    """(hf | hb) inputs kept split: a:(M,H) b:(M,H) -> (pg_f, pg_b), each (M, 4H)."""
    M, Ka = a.shape
    Kb = b.shape[1]
    G = wfa.shape[1]
    tm = _row_block(M)
    m_pad = _round_up(M, tm)
    if m_pad != M:
        a = jnp.pad(a, ((0, m_pad - M), (0, 0)))
        b = jnp.pad(b, ((0, m_pad - M), (0, 0)))
    itm = jnp.dtype(a.dtype).itemsize
    oitm = jnp.dtype(out_dtype).itemsize
    vmem = _vmem_limit(2 * itm * tm * (Ka + Kb) + 2 * itm * 2 * (Ka + Kb) * G
                       + 2 * 4 * 2 * G + 2 * oitm * 2 * tm * G + (4 << 20))
    of, ob = pl.pallas_call(
        _pregate_dual_kernel,
        out_shape=(jax.ShapeDtypeStruct((m_pad, G), out_dtype),
                   jax.ShapeDtypeStruct((m_pad, G), out_dtype)),
        grid=(m_pad // tm,),
        in_specs=[pl.BlockSpec((tm, Ka), lambda i: (i, 0)),
                  pl.BlockSpec((tm, Kb), lambda i: (i, 0)),
                  _const_spec((Ka, G), 1),
                  _const_spec((Kb, G), 1),
                  _const_spec((Ka, G), 1),
                  _const_spec((Kb, G), 1),
                  _const_spec((1, G), 1),
                  _const_spec((1, G), 1)],
        out_specs=(pl.BlockSpec((tm, G), lambda i: (i, 0)),
                   pl.BlockSpec((tm, G), lambda i: (i, 0))),
        compiler_params=pltpu.CompilerParams(
            dimension_semantics=("parallel",), vmem_limit_bytes=vmem),
        cost_estimate=pl.CostEstimate(
            flops=2 * 2 * m_pad * (Ka + Kb) * G, transcendentals=0,
            bytes_accessed=itm * (m_pad * (Ka + Kb) + 2 * (Ka + Kb) * G)
                           + oitm * 2 * m_pad * G),
    )(a, b, wfa, wfb, wba, wbb, b_f, b_b)
    if m_pad != M:
        of, ob = of[:M], ob[:M]
    return of, ob


def dual_matmul_bias_pallas(a, b, wa, wb, bias):
    """a @ wa + b @ wb + bias (f32 output), row-gridded."""
    M, Ka = a.shape
    Kb = b.shape[1]
    Nout = wa.shape[1]
    tm = _row_block(M)
    m_pad = _round_up(M, tm)
    if m_pad != M:
        a = jnp.pad(a, ((0, m_pad - M), (0, 0)))
        b = jnp.pad(b, ((0, m_pad - M), (0, 0)))
    itm = jnp.dtype(a.dtype).itemsize
    vmem = _vmem_limit(2 * itm * tm * (Ka + Kb) + 2 * itm * (Ka + Kb) * Nout
                       + 2 * 4 * Nout + 2 * 4 * tm * Nout + (4 << 20))
    out = pl.pallas_call(
        _dual_matmul_bias_kernel,
        out_shape=jax.ShapeDtypeStruct((m_pad, Nout), jnp.float32),
        grid=(m_pad // tm,),
        in_specs=[pl.BlockSpec((tm, Ka), lambda i: (i, 0)),
                  pl.BlockSpec((tm, Kb), lambda i: (i, 0)),
                  _const_spec((Ka, Nout), 1),
                  _const_spec((Kb, Nout), 1),
                  _const_spec((1, Nout), 1)],
        out_specs=pl.BlockSpec((tm, Nout), lambda i: (i, 0)),
        compiler_params=pltpu.CompilerParams(
            dimension_semantics=("parallel",), vmem_limit_bytes=vmem),
        cost_estimate=pl.CostEstimate(
            flops=2 * m_pad * (Ka + Kb) * Nout, transcendentals=0,
            bytes_accessed=itm * (m_pad * (Ka + Kb) + (Ka + Kb) * Nout)
                           + 4 * m_pad * Nout),
    )(a, b, wa, wb, bias)
    return out[:M] if m_pad != M else out


def bilstm_recurrence_pallas(pg_f, pg_b, whh_f_t, whh_b_t, out_dtype):
    """pg_f/pg_b: (T, N, 4H) per-direction pre-gates -> (hf, hb), each (T, N, H).

    Streams the time axis in chunks: grid = (batch tiles ["parallel"],
    time chunks ["arbitrary"]).  The backward direction consumes chunks from the
    back via its index_map, so both directions are fused per chunk while VMEM
    stays O(chunk).  Zero-padded (time / batch) rows keep the carry exactly at
    zero, so padding is numerically inert; padded rows are sliced off afterwards.
    """
    T, N, G = pg_f.shape
    H = whh_f_t.shape[0]
    tn = _batch_tile(N)
    n_pad = _round_up(N, tn)
    itm = jnp.dtype(pg_f.dtype).itemsize
    oitm = jnp.dtype(out_dtype).itemsize
    CT = _chunk_len(T, tn, H, max(itm, oitm))
    t_pad = _round_up(T, CT)
    nc = t_pad // CT
    if t_pad != T or n_pad != N:
        pad = ((0, t_pad - T), (0, n_pad - N), (0, 0))
        pg_f = jnp.pad(pg_f, pad)
        pg_b = jnp.pad(pg_b, pad)
    witm = jnp.dtype(whh_f_t.dtype).itemsize
    vmem = _vmem_limit(2 * 2 * itm * CT * tn * G        # streamed pre-gate chunks
                       + 2 * 2 * oitm * CT * tn * H     # streamed hidden-out chunks
                       + 2 * 2 * witm * H * G           # recurrent weights
                       + 4 * 4 * tn * H                 # f32 carries
                       + (4 << 20))
    hf, hb = pl.pallas_call(
        _bilstm_chunk_kernel,
        out_shape=(jax.ShapeDtypeStruct((t_pad, n_pad, H), out_dtype),
                   jax.ShapeDtypeStruct((t_pad, n_pad, H), out_dtype)),
        grid=(n_pad // tn, nc),
        in_specs=[pl.BlockSpec((CT, tn, G), lambda b, t: (t, b, 0)),
                  pl.BlockSpec((CT, tn, G), lambda b, t: (nc - 1 - t, b, 0)),
                  _const_spec((H, G), 2),
                  _const_spec((H, G), 2)],
        out_specs=(pl.BlockSpec((CT, tn, H), lambda b, t: (t, b, 0)),
                   pl.BlockSpec((CT, tn, H), lambda b, t: (nc - 1 - t, b, 0))),
        scratch_shapes=[pltpu.VMEM((tn, H), jnp.float32)] * 4,
        compiler_params=pltpu.CompilerParams(
            dimension_semantics=("parallel", "arbitrary"),
            vmem_limit_bytes=vmem),
        cost_estimate=pl.CostEstimate(
            flops=2 * 2 * t_pad * n_pad * H * G,
            transcendentals=2 * 5 * t_pad * n_pad * H,
            bytes_accessed=itm * 2 * t_pad * n_pad * G
                           + oitm * 2 * t_pad * n_pad * H + witm * 2 * H * G),
    )(pg_f, pg_b, whh_f_t, whh_b_t)
    if t_pad != T or n_pad != N:
        hf = hf[:T, :N]
        hb = hb[:T, :N]
    return hf, hb


def _lstm_stack_pallas(x_tnd, lstm_params, cdtype):
    """x_tnd: (T, N, C) -> (hf, hb) from the last layer, each (T, N, H) in cdtype."""
    T, N, _ = x_tnd.shape
    hf = hb = None
    for li, (wih_cat, whh_f_t, whh_b_t, b_cat) in enumerate(lstm_params):
        H = whh_f_t.shape[0]
        G = 4 * H
        wih = wih_cat.astype(cdtype)
        b_f, b_b = b_cat[:, :G], b_cat[:, G:]
        if li == 0:
            pgf2d, pgb2d = pregate_first_pallas(
                x_tnd.reshape(T * N, -1).astype(cdtype),
                wih[:, :G], wih[:, G:], b_f, b_b, cdtype)
        else:
            pgf2d, pgb2d = pregate_dual_pallas(
                hf.reshape(T * N, H), hb.reshape(T * N, H),
                wih[:H, :G], wih[H:, :G], wih[:H, G:], wih[H:, G:],
                b_f, b_b, cdtype)
        hf, hb = bilstm_recurrence_pallas(
            pgf2d.reshape(T, N, G), pgb2d.reshape(T, N, G),
            whh_f_t.astype(cdtype), whh_b_t.astype(cdtype), cdtype)
    return hf, hb


# --------------------------------------------------------------------------- pure-JAX reference
def _bilstm_layer_ref(x_tnd, wih_cat, whh_f_t, whh_b_t, b_cat):
    H = whh_f_t.shape[0]
    G = 4 * H
    N = x_tnd.shape[1]
    wih_f, wih_b = wih_cat[:, :G], wih_cat[:, G:]
    b_f, b_b = b_cat[:, :G], b_cat[:, G:]

    def cell(carry, xt, wih, whh, b):
        h, c = carry
        gates = xt @ wih + h @ whh + b
        i = jax.nn.sigmoid(gates[:, 0:H])
        f = jax.nn.sigmoid(gates[:, H:2 * H])
        g = jnp.tanh(gates[:, 2 * H:3 * H])
        o = jax.nn.sigmoid(gates[:, 3 * H:4 * H])
        c = f * c + i * g
        h = o * jnp.tanh(c)
        return (h, c), h

    z = jnp.zeros((N, H), dtype=jnp.float32)
    _, hf = lax.scan(lambda c, xt: cell(c, xt, wih_f, whh_f_t, b_f), (z, z), x_tnd)
    _, hb = lax.scan(lambda c, xt: cell(c, xt, wih_b, whh_b_t, b_b), (z, z), x_tnd[::-1])
    return hf, hb[::-1]


def _lstm_stack_ref(x_tnd, lstm_params):
    h = x_tnd
    hf = hb = None
    for wih_cat, whh_f_t, whh_b_t, b_cat in lstm_params:
        hf, hb = _bilstm_layer_ref(h, wih_cat, whh_f_t, whh_b_t, b_cat)
        h = jnp.concatenate([hf, hb], axis=-1)
    return hf, hb


# --------------------------------------------------------------------------- BLSTM forward
def unfold_jax(a, kernel_size, stride):
    """JAX version of the PyTorch `unfold` helper: [*OT, T] -> [*OT, F, K]."""
    length = a.shape[-1]
    n_frames = math.ceil(length / stride)
    tgt_length = (n_frames - 1) * stride + kernel_size
    pad = [(0, 0)] * (a.ndim - 1) + [(0, tgt_length - length)]
    a = jnp.pad(a, pad)
    idx = (jnp.arange(n_frames)[:, None] * stride
           + jnp.arange(kernel_size)[None, :])
    return a[..., idx]


def blstm_forward(x, params, max_steps, skip, use_pallas=True,
                  compute_dtype=jnp.bfloat16):
    """x: (B, C, T) float32. Mirrors BLSTM.forward exactly."""
    B, C, T = x.shape
    y = x
    framed = False
    width = stride = nframes = None
    if max_steps is not None and T > max_steps:
        width = max_steps
        stride = width // 2
        frames = unfold_jax(x, width, stride)            # (B, C, F, width)
        nframes = frames.shape[2]
        framed = True
        x = jnp.transpose(frames, (0, 2, 1, 3)).reshape(-1, C, width)

    x_tnd = jnp.transpose(x, (2, 0, 1))                  # (Tc, N, C) time-major
    Tc, N, _ = x_tnd.shape
    lw = params["lin_w_t"]                               # (2C, C)
    lb = params["lin_b"]                                 # (1, C)

    if use_pallas:
        hf, hb = _lstm_stack_pallas(x_tnd, params["lstm"], compute_dtype)
        out2d = dual_matmul_bias_pallas(
            hf.reshape(Tc * N, C), hb.reshape(Tc * N, C),
            lw[:C].astype(compute_dtype), lw[C:].astype(compute_dtype), lb)
    else:
        hf, hb = _lstm_stack_ref(x_tnd, params["lstm"])
        h2 = jnp.concatenate([hf, hb], axis=-1)
        out2d = h2.reshape(Tc * N, 2 * C) @ lw + lb

    h = out2d.reshape(Tc, N, C)
    x = jnp.transpose(h, (1, 2, 0))                      # (N, C, Tc)

    if framed:
        frames = x.reshape(B, -1, C, width)
        limit = stride // 2
        out = []
        for k in range(nframes):
            if k == 0:
                out.append(frames[:, k, :, :-limit])
            elif k == nframes - 1:
                out.append(frames[:, k, :, limit:])
            else:
                out.append(frames[:, k, :, limit:-limit])
        x = jnp.concatenate(out, -1)[..., :T]

    if skip:
        x = x + y
    return x


# --------------------------------------------------------------------------- params
def init_params(key, dim, layers):
    """Deterministic synthetic parameters matching nn.LSTM / nn.Linear shapes.

    Per layer: (wih_cat (Din, 8H) = [fwd|bwd] transposed input weights,
                whh_f_t (H, 4H), whh_b_t (H, 4H), b_cat (1, 8H) fused biases).
    """
    H = dim
    scale = 1.0 / math.sqrt(H)
    lstm = []
    for layer in range(layers):
        din = dim if layer == 0 else 2 * dim
        wih_t, whh_t, bias = [], [], []
        for _direction in range(2):
            key, k1, k2, k3, k4 = jax.random.split(key, 5)
            wih = jax.random.uniform(k1, (4 * H, din), minval=-scale, maxval=scale,
                                     dtype=jnp.float32)
            whh = jax.random.uniform(k2, (4 * H, H), minval=-scale, maxval=scale,
                                     dtype=jnp.float32)
            bih = jax.random.uniform(k3, (4 * H,), minval=-scale, maxval=scale,
                                     dtype=jnp.float32)
            bhh = jax.random.uniform(k4, (4 * H,), minval=-scale, maxval=scale,
                                     dtype=jnp.float32)
            wih_t.append(wih.T)                          # (din, 4H)
            whh_t.append(whh.T)                          # (H, 4H)
            bias.append((bih + bhh).reshape(1, 4 * H))
        wih_cat = jnp.concatenate(wih_t, axis=1)         # (din, 8H)
        b_cat = jnp.concatenate(bias, axis=1)            # (1, 8H)
        lstm.append((wih_cat, whh_t[0], whh_t[1], b_cat))
    key, k1, k2 = jax.random.split(key, 3)
    lw = jax.random.uniform(k1, (dim, 2 * dim), minval=-scale, maxval=scale,
                            dtype=jnp.float32)
    lb = jax.random.uniform(k2, (dim,), minval=-scale, maxval=scale,
                            dtype=jnp.float32)
    return {"lstm": lstm, "lin_w_t": lw.T, "lin_b": lb.reshape(1, dim)}


# --------------------------------------------------------------------------- main
if __name__ == "__main__":
    key = jax.random.PRNGKey(0)
    kx, kp = jax.random.split(key)

    B, C, T = 2, 32, 16          # dim = C = hidden_size = 32
    layers = 2                   # exercises the dual-input pre-gate path too
    max_steps = 8                # T > max_steps -> exercises the framed (unfold) path
    skip = True

    x = jax.random.normal(kx, (B, C, T), dtype=jnp.float32)
    params = init_params(kp, C, layers)

    _buffered1_ok()              # probe Buffered(1) support once, outside jit

    fwd_ref = jax.jit(functools.partial(blstm_forward, max_steps=max_steps,
                                        skip=skip, use_pallas=False))
    fwd_f32 = jax.jit(functools.partial(blstm_forward, max_steps=max_steps,
                                        skip=skip, use_pallas=True,
                                        compute_dtype=jnp.float32))
    fwd_bf16 = jax.jit(functools.partial(blstm_forward, max_steps=max_steps,
                                         skip=skip, use_pallas=True,
                                         compute_dtype=jnp.bfloat16))

    ref = jax.block_until_ready(fwd_ref(x, params))
    out_f32 = jax.block_until_ready(fwd_f32(x, params))
    out_bf16 = jax.block_until_ready(fwd_bf16(x, params))

    assert out_f32.shape == (B, C, T) and out_f32.dtype == jnp.float32
    assert jnp.allclose(out_f32, ref, atol=1e-4, rtol=1e-4), "f32 mismatch vs. reference"
    assert out_bf16.shape == (B, C, T) and out_bf16.dtype == jnp.float32
    # bf16 MXU operands with f32 accumulation: loosened tolerance (per review).
    assert jnp.allclose(out_bf16, ref, atol=5e-2, rtol=5e-2), "bf16 mismatch vs. reference"

    print("KERNEL_OK")
</pallas_src>

<mosaic_0001>
module attributes {stable_mosaic.version = 11 : i64} {
  func.func @_k(%arg0: i32, %arg1: memref<8x128xf32, #tpu.memory_space<vmem>>, %arg2: memref<8x128xf32, #tpu.memory_space<vmem>>, %arg3: memref<8x128xf32, #tpu.memory_space<vmem>>) attributes {dimension_semantics = [#tpu.dimension_semantics<arbitrary>], iteration_bounds = array<i64: 2>, scalar_prefetch = 0 : i64, scratch_operands = 0 : i64, tpu.core_type = #tpu.core_type<tc>, window_params = [{pipeline_mode = #tpu.pipeline_mode<synchronous>, transform_indices = @transform_0, window_bounds = array<i64: 8, 128>}, {pipeline_mode = #tpu.pipeline_mode<synchronous>, transform_indices = @transform_1, window_bounds = array<i64: 8, 128>}, {pipeline_mode = #tpu.pipeline_mode<synchronous>, transform_indices = @transform_2, window_bounds = array<i64: 8, 128>}]} {
    %c0 = arith.constant 0 : index
    %c0_0 = arith.constant 0 : index
    %0 = vector.load %arg1[%c0, %c0_0] : memref<8x128xf32, #tpu.memory_space<vmem>>, vector<8x128xf32>
    %c0_1 = arith.constant 0 : index
    %c0_2 = arith.constant 0 : index
    %1 = vector.load %arg2[%c0_1, %c0_2] : memref<8x128xf32, #tpu.memory_space<vmem>>, vector<8x128xf32>
    %2 = arith.addf %0, %1 : vector<8x128xf32>
    %c0_3 = arith.constant 0 : index
    %c0_4 = arith.constant 0 : index
    %3 = vector.load %arg3[%c0_3, %c0_4] : memref<8x128xf32, #tpu.memory_space<vmem>>, vector<8x128xf32>
    tpu.vector_store %arg3[%c0_3, %c0_4], %2 {strides = array<i32>} : memref<8x128xf32, #tpu.memory_space<vmem>>, vector<8x128xf32>,
    return
  }
  func.func @transform_0(%arg0: i32) -> (i32, i32) {
    %c0_i32 = arith.constant 0 : i32
    %c0_i32_0 = arith.constant 0 : i32
    %c0_i32_1 = arith.constant 0 : i32
    return %c0_i32, %c0_i32_0 : i32, i32
  }
  func.func @transform_1(%arg0: i32) -> (i32, i32) {
    %c0_i32 = arith.constant 0 : i32
    %c0_i32_0 = arith.constant 0 : i32
    %c0_i32_1 = arith.constant 0 : i32
    return %c0_i32, %c0_i32_0 : i32, i32
  }
  func.func @transform_2(%arg0: i32) -> (i32, i32) {
    %c0_i32 = arith.constant 0 : i32
    %c0_i32_0 = arith.constant 0 : i32
    %c0_i32_1 = arith.constant 0 : i32
    return %c0_i32, %c0_i32_0 : i32, i32
  }
}

</mosaic_0001>

<llo_original>
// kernel: tpu_custom_call.1
$region0: #{tpu_custom_call.1}
  #allocation0 [shape = 'u32[]', space=smem, size = 0x4, offset = 0x4, fixed_abs, tag = 'smem constant byte address 0x4 - core index']
  #allocation1 [shape = 'u32[72,128]{1,0:T(1,128)}', space=vmem, size = 0x9000, scoped, tag = 'internal scratch']
  %s0 = inlined_call_operand.hbm [shape: f32[8,128], index: 0, kind: input, shape index: {}]
  %s1 = inlined_call_operand.hbm [shape: f32[8,128], index: 1, kind: input, shape index: {}]
  %s2 = inlined_call_operand.hbm [shape: f32[8,128], index: 2, kind: output, shape index: {}]
  %s3 = sld [smem:[#allocation0]]
  $region49: #{tpu_custom_call.1} parent=0
    _
  %s5 = ssub.s32 1, %s3
  %s6 = scalar_select 0, %s5, %s3
  $region1: #{tpu_custom_call.1} parent=0
    #allocation2 [shape = 'u8[4096]{0}', space=vmem, size = 0x1000, scoped, tag = 'input window, operand 0, single buffered']
    #allocation3 [shape = 's32[2]{0}', space=sflag, size = 0x8, scoped, tag = 'scoped memory for tpu_custom_call.1']
    #allocation4 [shape = 's32[2]{0}', space=sflag, size = 0x8, scoped, tag = 'scoped memory for tpu_custom_call.1']
    #allocation5 [shape = 'u8[4096]{0}', space=vmem, size = 0x1000, scoped, tag = 'input window, operand 1, single buffered']
    #allocation6 [shape = 's32[1]{0}', space=sflag, size = 0x4, scoped, tag = 'scoped memory for tpu_custom_call.1']
    #allocation7 [shape = 'u8[4096]{0}', space=vmem, size = 0x1000, scoped, tag = 'output window, operand 0, single buffered']
    %7 = vsyncpa [#allocation3], 0
    %8 = vsyncpa [#allocation6], 0
    %9 = vsyncpa [#allocation4], 0
    loop: start=0, step=1, limit=4
    $region2: #{tpu_custom_call.1} parent=1 // loop_pre_header
      _
    $region3: #{tpu_custom_call.1} parent=1 // loop_header
      %s11 = sphi 0, %s15
      %p12 = scmp.ge.s32.totalorder %s11, 4
      %s19 = sphi 0, %s19
      %s21 = sphi 0, %s19
      %s22 = sphi 0, %s21
      %s36 = sphi 0, %s22
      %s40 = sphi 0, %s40
      %s42 = sphi 0, %s40
      %s43 = sphi 0, %s42
      %s57 = sphi 0, %s43
      %s61 = sphi 0, %s61
      %s63 = sphi 0, %s61
      %s64 = sphi 0, %s63
      %s78 = sphi 0, %s64
    $region4: #{tpu_custom_call.1} parent=1 // loop_header_branch
      %14 = sbr.rel (%p12) target = $region8
    $region5: #{tpu_custom_call.1} parent=1 // loop_body
      %s16 = ssub.s32 %s11, 1
      %s17 = ssub.s32 %s11, 2
      %s18 = sadd.s32 %s11, 1
      %s20 = sadd.s32 %s19, 1
      %p23 = scmp.eq.s32.totalorder %s11, 1
      %p24 = scmp.ne.s32.totalorder %s19, %s21
      %p25 = scmp.eq.s32.totalorder %s11, 0
      %p26 = por %p24, %p25
      %p27 = scmp.ne.s32.totalorder %s19, %s21
      %p28 = scmp.eq.s32.totalorder %s16, 1
      %p29 = por %p27, %p28
      %p30 = scmp.ne.s32.totalorder %s21, %s22
      %p31 = scmp.eq.s32.totalorder %s16, 0
      %p32 = por %p30, %p31
      %p33 = scmp.ne.s32.totalorder %s21, %s22
      %p34 = scmp.eq.s32.totalorder %s17, 1
      %p35 = por %p33, %p34
      %p37 = scmp.ne.s32.totalorder %s22, %s36
      %p38 = scmp.eq.s32.totalorder %s17, 0
      %p39 = por %p37, %p38
      %s41 = sadd.s32 %s40, 1
      %p44 = scmp.eq.s32.totalorder %s11, 1
      %p45 = scmp.ne.s32.totalorder %s40, %s42
      %p46 = scmp.eq.s32.totalorder %s11, 0
      %p47 = por %p45, %p46
      %p48 = scmp.ne.s32.totalorder %s40, %s42
      %p49 = scmp.eq.s32.totalorder %s16, 1
      %p50 = por %p48, %p49
      %p51 = scmp.ne.s32.totalorder %s42, %s43
      %p52 = scmp.eq.s32.totalorder %s16, 0
      %p53 = por %p51, %p52
      %p54 = scmp.ne.s32.totalorder %s42, %s43
      %p55 = scmp.eq.s32.totalorder %s17, 1
      %p56 = por %p54, %p55
      %p58 = scmp.ne.s32.totalorder %s43, %s57
      %p59 = scmp.eq.s32.totalorder %s17, 0
      %p60 = por %p58, %p59
      %s62 = sadd.s32 %s61, 1
      %p65 = scmp.eq.s32.totalorder %s11, 1
      %p66 = scmp.ne.s32.totalorder %s61, %s63
      %p67 = scmp.eq.s32.totalorder %s11, 0
      %p68 = por %p66, %p67
      %p69 = scmp.ne.s32.totalorder %s61, %s63
      %p70 = scmp.eq.s32.totalorder %s16, 1
      %p71 = por %p69, %p70
      %p72 = scmp.ne.s32.totalorder %s63, %s64
      %p73 = scmp.eq.s32.totalorder %s16, 0
      %p74 = por %p72, %p73
      %p75 = scmp.ne.s32.totalorder %s63, %s64
      %p76 = scmp.eq.s32.totalorder %s17, 1
      %p77 = por %p75, %p76
      %p79 = scmp.ne.s32.totalorder %s64, %s78
      %p80 = scmp.eq.s32.totalorder %s17, 0
      %p81 = por %p79, %p80
      %p82 = scmp.le.s32.totalorder 1, %s11
      %p83 = scmp.lt.s32.totalorder %s11, 3
      %p84 = pnand %p82, %p83
      %p85 = pneg %p84
      // Predicated region
      $region9: #{tpu_custom_call.1} parent=5 // pred_check
        _
      $region10: #{tpu_custom_call.1} parent=5 // pred_check_branch
        %87 = sbr.rel (%p84) target = $region12
      $region11: #{tpu_custom_call.1} parent=5 // pred_region
        %s88 = ssub.s32 %s11, 1
        // Predicated region
        $region13: #{tpu_custom_call.1} parent=11 // pred_check
          %p89 = pneg %p32
        $region14: #{tpu_custom_call.1} parent=11 // pred_check_branch
          %91 = sbr.rel (%p89) target = $region16
        $region15: #{tpu_custom_call.1} parent=11 // pred_region
          %93 = vsyncadd [#allocation3], 0
          %s95 = sshll.u32 %s0, 4
          %s96 = int_to_ptr.hbm [resolvable:$true] %s95
          %s97 = sshll.u32 [#allocation2], 4
          %s98 = int_to_ptr.vmem [resolvable:$true] %s97
          %100 = dma.hbm_to_vmem [thread:$0]  %s96, 128, %s98, [#allocation3]
        $region16: #{tpu_custom_call.1} parent=11 // pred_fallthru
          _
        // Predicated region
        $region17: #{tpu_custom_call.1} parent=11 // pred_check
          %p101 = pneg %p53
        $region18: #{tpu_custom_call.1} parent=11 // pred_check_branch
          %103 = sbr.rel (%p101) target = $region20
        $region19: #{tpu_custom_call.1} parent=11 // pred_region
          %105 = vsyncadd [#allocation6], 0
          %s107 = sshll.u32 %s1, 4
          %s108 = int_to_ptr.hbm [resolvable:$true] %s107
          %s109 = sshll.u32 [#allocation5], 4
          %s110 = int_to_ptr.vmem [resolvable:$true] %s109
          %112 = dma.hbm_to_vmem [thread:$0]  %s108, 128, %s110, [#allocation6]
        $region20: #{tpu_custom_call.1} parent=11 // pred_fallthru
          _
      $region12: #{tpu_custom_call.1} parent=5 // pred_fallthru
        _
      %p113 = scmp.lt.s32.totalorder %s11, 2
      // Predicated region
      $region21: #{tpu_custom_call.1} parent=5 // pred_check
        %p114 = pneg %p113
      $region22: #{tpu_custom_call.1} parent=5 // pred_check_branch
        %116 = sbr.rel (%p114) target = $region24
      $region23: #{tpu_custom_call.1} parent=5 // pred_region
        _
      $region24: #{tpu_custom_call.1} parent=5 // pred_fallthru
        _
      %p117 = scmp.le.s32.totalorder 1, %s11
      %p118 = scmp.lt.s32.totalorder %s11, 3
      %p119 = pnand %p117, %p118
      %p120 = pneg %p119
      // Predicated region
      $region25: #{tpu_custom_call.1} parent=5 // pred_check
        _
      $region26: #{tpu_custom_call.1} parent=5 // pred_check_branch
        %122 = sbr.rel (%p119) target = $region28
      $region27: #{tpu_custom_call.1} parent=5 // pred_region
        %s123 = ssub.s32 %s11, 1
        // Predicated region
        $region29: #{tpu_custom_call.1} parent=27 // pred_check
          %p124 = pneg %p32
        $region30: #{tpu_custom_call.1} parent=27 // pred_check_branch
          %126 = sbr.rel (%p124) target = $region32
        $region31: #{tpu_custom_call.1} parent=27 // pred_region
          %128 = dma.done [#allocation3], 128
        $region32: #{tpu_custom_call.1} parent=27 // pred_fallthru
          _
        // Predicated region
        $region33: #{tpu_custom_call.1} parent=27 // pred_check
          %p129 = pneg %p53
        $region34: #{tpu_custom_call.1} parent=27 // pred_check_branch
          %131 = sbr.rel (%p129) target = $region36
        $region35: #{tpu_custom_call.1} parent=27 // pred_region
          %133 = dma.done [#allocation6], 128
        $region36: #{tpu_custom_call.1} parent=27 // pred_fallthru
          _
        %p134 = pneg %p32
        %p135 = pneg %p29
        %p136 = pneg %p53
        %p137 = pneg %p50
        %p138 = pneg %p74
        %p139 = pneg %p71
        %v140 = vld [vmem:[#allocation2] sm:$0xff]
        %v141 = vld [vmem:[#allocation5] sm:$0xff]
        %v142 = vadd.f32 %v140, %v141
        %143 = vst [vmem:[#allocation7] sm:$0xff] %v142
        // Predicated region
        $region37: #{tpu_custom_call.1} parent=27 // pred_check
          %p144 = pneg %p71
        $region38: #{tpu_custom_call.1} parent=27 // pred_check_branch
          %146 = sbr.rel (%p144) target = $region40
        $region39: #{tpu_custom_call.1} parent=27 // pred_region
          %148 = vsyncadd [#allocation4], 0
          %s150 = sshll.u32 [#allocation7], 4
          %s151 = int_to_ptr.vmem [resolvable:$true] %s150
          %s152 = sshll.u32 %s2, 4
          %s153 = int_to_ptr.hbm [resolvable:$true] %s152
          %155 = dma.vmem_to_hbm [thread:$0]  %s151, 128, %s153, [#allocation4]
        $region40: #{tpu_custom_call.1} parent=27 // pred_fallthru
          _
        // Predicated region
        $region41: #{tpu_custom_call.1} parent=27 // pred_check
          %p156 = pneg %p71
        $region42: #{tpu_custom_call.1} parent=27 // pred_check_branch
          %158 = sbr.rel (%p156) target = $region44
        $region43: #{tpu_custom_call.1} parent=27 // pred_region
          %160 = dma.done [#allocation4], 128
        $region44: #{tpu_custom_call.1} parent=27 // pred_fallthru
          _
      $region28: #{tpu_custom_call.1} parent=5 // pred_fallthru
        _
      %p161 = scmp.le.s32.totalorder 2, %s11
      // Predicated region
      $region45: #{tpu_custom_call.1} parent=5 // pred_check
        %p162 = pneg %p161
      $region46: #{tpu_custom_call.1} parent=5 // pred_check_branch
        %164 = sbr.rel (%p162) target = $region48
      $region47: #{tpu_custom_call.1} parent=5 // pred_region
        %s165 = ssub.s32 %s11, 2
      $region48: #{tpu_custom_call.1} parent=5 // pred_fallthru
        _
    $region6: #{tpu_custom_call.1} parent=1 // loop_footer
      %s15 = sadd.s32 1, %s11
    $region7: #{tpu_custom_call.1} parent=1 // loop_footer_branch
      %10 = sbr.rel target = $region3
    $region8: #{tpu_custom_call.1} parent=1 // loop_exit
      _
    %166 = vsyncpa [#allocation3], 1
    %s167 = scalar_lea.sflag [#allocation3], 1
    %168 = vsyncpa %s167, 1
    %169 = vsyncpa [#allocation6], 1
    %170 = vsyncpa [#allocation4], 1
    %s171 = scalar_lea.sflag [#allocation4], 1
    %172 = vsyncpa %s171, 1

// kernel: custom-call.3
$region0: #{custom-call.3}
  %s0 = inlined_call_operand.vmem [shape: f32[8,32], index: 0, kind: output, shape index: {}]

// kernel: custom-call.2
$region0: #{custom-call.2}
  %s0 = inlined_call_operand.vmem [shape: bf16[8,32], index: 0, kind: output, shape index: {}]

</llo_original>
